<compile_context>
chip_gen: v7x
topology: tpu7x:2x2x1
jax: 0.10.0
libtpu: 0.0.40
codegen_flags: <defaults>
</compile_context>

<pallas_src>
import functools
import math
from typing import Optional

import numpy as np
import jax
import jax.numpy as jnp
from jax.experimental import pallas as pl
from jax.experimental.pallas import tpu as pltpu


def _round_up(x: int, m: int) -> int:
    return ((x + m - 1) // m) * m


def _hann_window(n_fft: int) -> np.ndarray:
    # torch.hann_window default (periodic=True)
    j = np.arange(n_fft, dtype=np.float64)
    return (0.5 * (1.0 - np.cos(2.0 * np.pi * j / n_fft))).astype(np.float32)


def _istft_band_kernel(x_ref, c_ref, inv_ref, o_ref, acc_ref, *,
                       f_own: int, halo: int, n_frames: int):
    # x_ref  : (1, bc_blk, K)     spectra of one frame for this bc block
    # c_ref  : (1, K, T_tile)     banded windowed-irfft basis for local frame p
    # inv_ref: (1, T_tile)        1 / squared-window OLA envelope for this tile
    # o_ref  : (bc_blk, T_tile)   normalized waveform tile (written at p==last)
    # acc_ref: (bc_blk, T_tile)   f32 accumulator
    j = pl.program_id(1)          # time tile index
    p = pl.program_id(2)          # local frame index within the band

    @pl.when(p == 0)
    def _():
        acc_ref[...] = jnp.zeros_like(acc_ref)

    t = j * f_own + p - halo      # global frame index

    @pl.when(jnp.logical_and(t >= 0, t < n_frames))
    def _():
        acc_ref[...] += jnp.dot(x_ref[0], c_ref[0],
                                preferred_element_type=jnp.float32)

    @pl.when(p == pl.num_programs(2) - 1)
    def _():
        o_ref[...] = (acc_ref[...] * inv_ref[...]).astype(o_ref.dtype)


class PallasISTFT:
    """Pallas equivalent of TorchISTFT (batched multichannel inverse STFT)."""

    def __init__(self, n_fft: int = 4096, n_hop: int = 1024,
                 center: bool = False, sample_rate: float = 44100.0,
                 window: Optional[np.ndarray] = None,
                 t_tile: Optional[int] = None,
                 use_bf16: bool = False) -> None:
        self.n_fft = n_fft
        self.n_hop = n_hop
        self.center = center
        self.sample_rate = sample_rate
        self.use_bf16 = use_bf16
        if window is None:
            self.window = _hann_window(n_fft)  # deterministic parameter init
        else:
            self.window = np.asarray(window, dtype=np.float32)
        if t_tile is None:
            t_tile = (n_hop * 128) // math.gcd(n_hop, 128)   # lcm(hop, 128)
        assert t_tile % 128 == 0 and t_tile % n_hop == 0, t_tile
        self.t_tile = t_tile
        self._band_cache = {}
        self._env_cache = {}

    # ------------------------------------------------------------ band table
    def _band_table(self, t_tile: int):
        """Tile-invariant banded synthesis basis (independent of n_frames)."""
        if t_tile in self._band_cache:
            return self._band_cache[t_tile]

        n_fft, hop = self.n_fft, self.n_hop
        n_bins = n_fft // 2 + 1
        K = 2 * n_bins
        halo = -(-n_fft // hop) - 1          # frames starting before the tile
        f_own = t_tile // hop                # frames starting inside the tile
        f_tile = f_own + halo

        # Windowed one-sided inverse-DFT basis, rows in the input's native
        # interleaved order: row = bin*2 + {0: real, 1: imag}.
        kk = np.arange(n_bins, dtype=np.float64)[:, None]
        nn = np.arange(n_fft, dtype=np.float64)[None, :]
        ang = 2.0 * np.pi * kk * nn / n_fft
        scale = np.full((n_bins, 1), 2.0 / n_fft, dtype=np.float64)
        scale[0, 0] = 1.0 / n_fft
        if n_fft % 2 == 0:
            scale[-1, 0] = 1.0 / n_fft
        w = self.window.astype(np.float64)[None, :]
        basis = np.zeros((K, n_fft), dtype=np.float64)
        basis[0::2] = np.cos(ang) * scale * w
        basis[1::2] = -np.sin(ang) * scale * w

        band = np.zeros((f_tile, K, t_tile), dtype=np.float64)
        for p in range(f_tile):
            rel = (p - halo) * hop           # frame start relative to tile start
            lo, hi = max(0, rel), min(t_tile, rel + n_fft)
            if lo < hi:
                band[p, :, lo:hi] = basis[:, lo - rel:hi - rel]
        band = band.astype(np.float32)

        tables = (band, K, f_own, halo, f_tile)
        self._band_cache[t_tile] = tables
        return tables

    # ------------------------------------------------------------ envelope
    def _inv_env(self, n_frames: int, out_pad: int) -> np.ndarray:
        key = (n_frames, out_pad)
        if key in self._env_cache:
            return self._env_cache[key]
        n_fft, hop = self.n_fft, self.n_hop
        out_len = n_fft + hop * (n_frames - 1)
        env = np.zeros((out_len,), dtype=np.float64)
        wsq = self.window.astype(np.float64) ** 2
        for t in range(n_frames):
            env[t * hop:t * hop + n_fft] += wsq
        ok = env > 1e-11
        inv = np.where(ok, 1.0 / np.where(ok, env, 1.0), 0.0)
        inv_pad = np.zeros((1, out_pad), dtype=np.float32)
        inv_pad[0, :out_len] = inv.astype(np.float32)
        self._env_cache[key] = inv_pad
        return inv_pad

    # ------------------------------------------------------------ call
    def __call__(self, X: jnp.ndarray, length: Optional[int] = None) -> jnp.ndarray:
        shape = X.shape                       # (..., n_bins, n_frames, 2)
        n_bins_in, n_frames = int(shape[-3]), int(shape[-2])
        n_fft, hop = self.n_fft, self.n_hop
        n_bins = n_fft // 2 + 1
        assert n_bins_in == n_bins, (n_bins_in, n_bins)
        assert int(shape[-1]) == 2, shape

        t_tile = self.t_tile
        band_np, K, f_own, halo, f_tile = self._band_table(t_tile)

        out_len = n_fft + hop * (n_frames - 1)
        num_tiles = -(-out_len // t_tile)
        out_pad = num_tiles * t_tile
        inv_np = self._inv_env(n_frames, out_pad)

        bc = int(np.prod(shape[:-3], dtype=np.int64)) if len(shape) > 3 else 1
        comp_dtype = jnp.bfloat16 if self.use_bf16 else jnp.float32

        Xf = jnp.asarray(X, jnp.float32).reshape(bc, n_bins, n_frames, 2)
        # Single frame-major transpose (so each time tile DMAs exactly the
        # frames overlapping it); K stays the native interleaved (re, im)
        # per-bin order - no contraction-dim padding.
        x = jnp.moveaxis(Xf, 2, 0).reshape(n_frames, bc, K).astype(comp_dtype)

        # Pad batch*channels to >= 8 rows; split large batches into 128-row blocks.
        bc_pad = max(8, _round_up(bc, 8))
        if bc_pad <= 128:
            bc_blk = bc_pad
        else:
            bc_blk = 128
            bc_pad = _round_up(bc_pad, bc_blk)
        if bc_pad > bc:
            x = jnp.pad(x, ((0, 0), (0, bc_pad - bc), (0, 0)))

        band = jnp.asarray(band_np, dtype=comp_dtype)
        inv_env = jnp.asarray(inv_np)         # f32 (applied after f32 accumulation)

        grid = (bc_pad // bc_blk, num_tiles, f_tile)
        kernel = functools.partial(_istft_band_kernel, f_own=f_own, halo=halo,
                                   n_frames=n_frames)

        elem = 2 if self.use_bf16 else 4
        blk_bytes = ((bc_blk * K + K * t_tile) * elem
                     + (t_tile + 2 * bc_blk * t_tile) * 4)
        vmem_limit = int(min(64 << 20, max(16 << 20, 3 * blk_bytes + (2 << 20))))
        cost = pl.CostEstimate(
            flops=2 * bc_pad * K * t_tile * num_tiles * f_tile,
            transcendentals=0,
            bytes_accessed=int(x.size * elem * max(1, -(-f_tile // max(f_own, 1)))
                               + band.size * elem * grid[0] * num_tiles
                               + inv_env.size * 4
                               + bc_pad * out_pad * 4))

        y = pl.pallas_call(
            kernel,
            out_shape=jax.ShapeDtypeStruct((bc_pad, out_pad), jnp.float32),
            grid_spec=pltpu.PrefetchScalarGridSpec(
                num_scalar_prefetch=0,
                grid=grid,
                in_specs=[
                    # one frame of spectra; clamp the halo / tail frames into
                    # range (their contribution is skipped in the kernel).
                    pl.BlockSpec(
                        (1, bc_blk, K),
                        lambda b, j, p: (jnp.clip(j * f_own + p - halo,
                                                  0, n_frames - 1), b, 0)),
                    # banded basis slab for local frame p (tile-invariant).
                    pl.BlockSpec((1, K, t_tile), lambda b, j, p: (p, 0, 0)),
                    # 1/envelope columns for this time tile.
                    pl.BlockSpec((1, t_tile), lambda b, j, p: (0, j)),
                ],
                out_specs=pl.BlockSpec((bc_blk, t_tile), lambda b, j, p: (b, j)),
                scratch_shapes=[pltpu.VMEM((bc_blk, t_tile), jnp.float32)],
            ),
            compiler_params=pltpu.CompilerParams(
                dimension_semantics=("parallel", "parallel", "arbitrary"),
                vmem_limit_bytes=vmem_limit),
            cost_estimate=cost,
        )(x, band, inv_env)

        # Crop padding; apply center / length semantics.
        y = y[:bc, :out_len]
        if self.center:
            y = y[:, n_fft // 2: out_len - n_fft // 2]
        if length is not None:
            cur = y.shape[-1]
            if length <= cur:
                y = y[:, :length]
            else:
                y = jnp.pad(y, ((0, 0), (0, length - cur)))
        return y.reshape(shape[:-3] + (y.shape[-1],))


def _reference_istft(X, n_fft, hop, window, center=False, length=None):
    """Pure-JAX reference (irfft + overlap-add) for correctness checking."""
    shape = X.shape
    Xc = (X[..., 0] + 1j * X[..., 1]).reshape(-1, shape[-3], shape[-2])
    Xc = jnp.moveaxis(Xc, -1, -2)                       # (BC, frames, bins)
    frames = jnp.fft.irfft(Xc, n=n_fft, axis=-1) * window[None, None, :]
    bc, n_frames, _ = frames.shape
    out_len = n_fft + hop * (n_frames - 1)
    y = jnp.zeros((bc, out_len), dtype=jnp.float32)
    env = jnp.zeros((out_len,), dtype=jnp.float32)
    for t in range(n_frames):
        y = y.at[:, t * hop:t * hop + n_fft].add(frames[:, t, :])
        env = env.at[t * hop:t * hop + n_fft].add(window ** 2)
    y = y * jnp.where(env > 1e-11, 1.0 / jnp.where(env > 1e-11, env, 1.0), 0.0)[None, :]
    if center:
        y = y[:, n_fft // 2: out_len - n_fft // 2]
    if length is not None:
        y = y[:, :length]
    return y.reshape(shape[:-3] + (y.shape[-1],))


if __name__ == "__main__":
    n_fft, n_hop = 64, 16
    nb_samples, nb_channels, nb_frames = 2, 2, 8
    n_bins = n_fft // 2 + 1

    key = jax.random.PRNGKey(0)
    X = jax.random.normal(
        key, (nb_samples, nb_channels, n_bins, nb_frames, 2), dtype=jnp.float32)
    window = jnp.asarray(_hann_window(n_fft))

    # 1) module defaults (center=False), f32 path.
    istft = PallasISTFT(n_fft=n_fft, n_hop=n_hop, center=False)
    y = jax.block_until_ready(istft(X))
    expected_len = n_fft + n_hop * (nb_frames - 1)
    assert y.shape == (nb_samples, nb_channels, expected_len), y.shape
    y_ref = _reference_istft(X, n_fft, n_hop, window, center=False)
    err = float(jnp.max(jnp.abs(y - y_ref)))
    assert err < 1e-3, f"f32 max abs error vs reference: {err}"

    # 2) center=True with explicit length crop.
    istft_c = PallasISTFT(n_fft=n_fft, n_hop=n_hop, center=True)
    length = n_hop * (nb_frames - 1) - 5
    y_c = jax.block_until_ready(istft_c(X, length=length))
    assert y_c.shape == (nb_samples, nb_channels, length), y_c.shape
    y_c_ref = _reference_istft(X, n_fft, n_hop, window, center=True, length=length)
    err_c = float(jnp.max(jnp.abs(y_c - y_c_ref)))
    assert err_c < 1e-3, f"center f32 max abs error vs reference: {err_c}"

    # 3) opt-in bf16 storage (f32 MXU accumulation), looser tolerance.
    istft_b = PallasISTFT(n_fft=n_fft, n_hop=n_hop, center=True, use_bf16=True)
    y_b = jax.block_until_ready(istft_b(X))
    y_b_ref = _reference_istft(X, n_fft, n_hop, window, center=True)
    err_b = float(jnp.max(jnp.abs(y_b - y_b_ref)))
    assert err_b < 5e-2, f"bf16 max abs error vs reference: {err_b}"

    print("KERNEL_OK")
</pallas_src>

<mosaic_0001>
module attributes {stable_mosaic.version = 11 : i64} {
  func.func @_istft_band_kernel(%arg0: i32, %arg1: i32, %arg2: i32, %arg3: memref<1x8x66xf32, #tpu.memory_space<vmem>>, %arg4: memref<1x66x128xf32, #tpu.memory_space<vmem>>, %arg5: memref<1x128xf32, #tpu.memory_space<vmem>>, %arg6: memref<8x128xf32, #tpu.memory_space<vmem>>, %arg7: memref<8x128xf32, #tpu.memory_space<vmem>>) attributes {dimension_semantics = [#tpu.dimension_semantics<parallel>, #tpu.dimension_semantics<parallel>, #tpu.dimension_semantics<arbitrary>], iteration_bounds = array<i64: 1, 2, 11>, scalar_prefetch = 0 : i64, scratch_operands = 1 : i64, tpu.core_type = #tpu.core_type<tc>, window_params = [{transform_indices = @transform_0, window_bounds = array<i64: 1, 8, 66>}, {transform_indices = @transform_1, window_bounds = array<i64: 1, 66, 128>}, {transform_indices = @transform_2, window_bounds = array<i64: 1, 128>}, {transform_indices = @transform_3, window_bounds = array<i64: 8, 128>}]} {
    %c0_i32 = arith.constant 0 : i32
    %0 = arith.cmpi eq, %arg2, %c0_i32 : i32
    %1 = arith.extui %0 : i1 to i32
    %c0_i32_0 = arith.constant 0 : i32
    %2 = arith.cmpi ne, %1, %c0_i32_0 : i32
    scf.if %2 {
      %cst = arith.constant 0.000000e+00 : f32
      %14 = vector.broadcast %cst : f32 to vector<8x128xf32>
      %c0 = arith.constant 0 : index
      %c0_5 = arith.constant 0 : index
      %15 = vector.load %arg7[%c0, %c0_5] : memref<8x128xf32, #tpu.memory_space<vmem>>, vector<8x128xf32>
      tpu.vector_store %arg7[%c0, %c0_5], %14 {strides = array<i32>} : memref<8x128xf32, #tpu.memory_space<vmem>>, vector<8x128xf32>,
    } else {
    }
    %c8_i32 = arith.constant 8 : i32
    %3 = arith.muli %arg1, %c8_i32 : i32
    %4 = arith.addi %3, %arg2 : i32
    %c3_i32 = arith.constant 3 : i32
    %5 = arith.subi %4, %c3_i32 : i32
    %c0_i32_1 = arith.constant 0 : i32
    %6 = arith.cmpi sge, %5, %c0_i32_1 : i32
    %c8_i32_2 = arith.constant 8 : i32
    %7 = arith.cmpi slt, %5, %c8_i32_2 : i32
    %8 = arith.andi %6, %7 : i1
    %9 = arith.extui %8 : i1 to i32
    %c0_i32_3 = arith.constant 0 : i32
    %10 = arith.cmpi ne, %9, %c0_i32_3 : i32
    scf.if %10 {
      %c0 = arith.constant 0 : index
      %c0_5 = arith.constant 0 : index
      %14 = vector.load %arg7[%c0, %c0_5] : memref<8x128xf32, #tpu.memory_space<vmem>>, vector<8x128xf32>
      %c0_6 = arith.constant 0 : index
      %c0_7 = arith.constant 0 : index
      %c0_8 = arith.constant 0 : index
      %15 = vector.load %arg3[%c0_6, %c0_7, %c0_8] : memref<1x8x66xf32, #tpu.memory_space<vmem>>, vector<1x8x66xf32>
      %16 = vector.shape_cast %15 : vector<1x8x66xf32> to vector<8x66xf32>
      %c0_9 = arith.constant 0 : index
      %c0_10 = arith.constant 0 : index
      %c0_11 = arith.constant 0 : index
      %17 = vector.load %arg4[%c0_9, %c0_10, %c0_11] : memref<1x66x128xf32, #tpu.memory_space<vmem>>, vector<1x66x128xf32>
      %18 = vector.shape_cast %17 : vector<1x66x128xf32> to vector<66x128xf32>
      %cst = arith.constant dense<0.000000e+00> : vector<8x128xf32>
      %19 = tpu.matmul %16, %18, %cst {dimension_numbers = #tpu.dot_dimension_numbers<[1], [0], [0], [1], [0, 0, 1, 1], [], []>} : vector<8x66xf32>, vector<66x128xf32>, vector<8x128xf32> -> vector<8x128xf32>
      %20 = arith.addf %14, %19 : vector<8x128xf32>
      %c0_12 = arith.constant 0 : index
      %c0_13 = arith.constant 0 : index
      %21 = vector.load %arg7[%c0_12, %c0_13] : memref<8x128xf32, #tpu.memory_space<vmem>>, vector<8x128xf32>
      tpu.vector_store %arg7[%c0_12, %c0_13], %20 {strides = array<i32>} : memref<8x128xf32, #tpu.memory_space<vmem>>, vector<8x128xf32>,
    } else {
    }
    %c10_i32 = arith.constant 10 : i32
    %11 = arith.cmpi eq, %arg2, %c10_i32 : i32
    %12 = arith.extui %11 : i1 to i32
    %c0_i32_4 = arith.constant 0 : i32
    %13 = arith.cmpi ne, %12, %c0_i32_4 : i32
    scf.if %13 {
      %c0 = arith.constant 0 : index
      %c0_5 = arith.constant 0 : index
      %14 = vector.load %arg7[%c0, %c0_5] : memref<8x128xf32, #tpu.memory_space<vmem>>, vector<8x128xf32>
      %c0_6 = arith.constant 0 : index
      %c0_7 = arith.constant 0 : index
      %15 = vector.load %arg5[%c0_6, %c0_7] : memref<1x128xf32, #tpu.memory_space<vmem>>, vector<1x128xf32>
      %16 = vector.broadcast %15 : vector<1x128xf32> to vector<8x128xf32>
      %17 = arith.mulf %14, %16 : vector<8x128xf32>
      %c0_8 = arith.constant 0 : index
      %c0_9 = arith.constant 0 : index
      %18 = vector.load %arg6[%c0_8, %c0_9] : memref<8x128xf32, #tpu.memory_space<vmem>>, vector<8x128xf32>
      tpu.vector_store %arg6[%c0_8, %c0_9], %17 {strides = array<i32>} : memref<8x128xf32, #tpu.memory_space<vmem>>, vector<8x128xf32>,
    } else {
    }
    return
  }
  func.func @transform_0(%arg0: i32, %arg1: i32, %arg2: i32) -> (i32, i32, i32) {
    %c8_i32 = arith.constant 8 : i32
    %0 = arith.muli %arg1, %c8_i32 : i32
    %1 = arith.addi %0, %arg2 : i32
    %c3_i32 = arith.constant 3 : i32
    %2 = arith.subi %1, %c3_i32 : i32
    %c0_i32 = arith.constant 0 : i32
    %c7_i32 = arith.constant 7 : i32
    %3 = arith.maxsi %c0_i32, %2 : i32
    %4 = arith.minsi %c7_i32, %3 : i32
    %c0_i32_0 = arith.constant 0 : i32
    %c0_i32_1 = arith.constant 0 : i32
    return %4, %arg0, %c0_i32_0 : i32, i32, i32
  }
  func.func @transform_1(%arg0: i32, %arg1: i32, %arg2: i32) -> (i32, i32, i32) {
    %c0_i32 = arith.constant 0 : i32
    %c0_i32_0 = arith.constant 0 : i32
    %c0_i32_1 = arith.constant 0 : i32
    return %arg2, %c0_i32, %c0_i32_0 : i32, i32, i32
  }
  func.func @transform_2(%arg0: i32, %arg1: i32, %arg2: i32) -> (i32, i32) {
    %c0_i32 = arith.constant 0 : i32
    %c0_i32_0 = arith.constant 0 : i32
    return %c0_i32, %arg1 : i32, i32
  }
  func.func @transform_3(%arg0: i32, %arg1: i32, %arg2: i32) -> (i32, i32) {
    %c0_i32 = arith.constant 0 : i32
    return %arg0, %arg1 : i32, i32
  }
}

</mosaic_0001>

<llo_original>
// kernel: tpu_custom_call.1
$region0: #{tpu_custom_call.1}
  #allocation0 [shape = 'u32[]', space=smem, size = 0x4, offset = 0x4, fixed_abs, tag = 'smem constant byte address 0x4 - core index']
  #allocation1 [shape = 'u32[144,128]{1,0:T(1,128)}', space=vmem, size = 0x12000, scoped, tag = 'internal scratch']
  #allocation2 [shape = 'f32[8,128]{1,0:T(8,128)}', space=vmem, size = 0x1000, scoped, tag = 'scratch operand']
  %s0 = inlined_call_operand.hbm [shape: f32[8,8,66], index: 0, kind: input, shape index: {}]
  %s1 = inlined_call_operand.hbm [shape: f32[11,66,128], index: 1, kind: input, shape index: {}]
  %s2 = inlined_call_operand.vmem [shape: f32[1,256], index: 2, kind: input, shape index: {}]
  %s3 = inlined_call_operand.hbm [shape: f32[8,256], index: 3, kind: output, shape index: {}]
  %s4 = sld [smem:[#allocation0]]
  $region65: #{tpu_custom_call.1} parent=0
    _
  %s6 = ssub.s32 1, %s4
  %s7 = scalar_select 0, %s6, %s4
  $region1: #{tpu_custom_call.1} parent=0
    #allocation3 [shape = 'u8[8192]{0}', space=vmem, size = 0x2000, scoped, tag = 'input window, operand 0']
    #allocation4 [shape = 's32[2]{0}', space=sflag, size = 0x8, scoped, tag = 'scoped memory for tpu_custom_call.1']
    #allocation5 [shape = 's32[2]{0}', space=sflag, size = 0x8, scoped, tag = 'scoped memory for tpu_custom_call.1']
    #allocation6 [shape = 'u8[73728]{0}', space=vmem, size = 0x12000, scoped, tag = 'input window, operand 1']
    #allocation7 [shape = 's32[2]{0}', space=sflag, size = 0x8, scoped, tag = 'scoped memory for tpu_custom_call.1']
    #allocation8 [shape = 'u8[8192]{0}', space=vmem, size = 0x2000, scoped, tag = 'output window, operand 0']
    %8 = vsyncpa [#allocation4], 0
    %s9 = scalar_lea.sflag [#allocation4], 1
    %10 = vsyncpa %s9, 0
    %11 = vsyncpa [#allocation7], 0
    %s12 = scalar_lea.sflag [#allocation7], 1
    %13 = vsyncpa %s12, 0
    %14 = vsyncpa [#allocation5], 0
    %s15 = scalar_lea.sflag [#allocation5], 1
    %16 = vsyncpa %s15, 0
    loop: start=0, step=1, limit=24
    $region2: #{tpu_custom_call.1} parent=1 // loop_pre_header
      _
    $region3: #{tpu_custom_call.1} parent=1 // loop_header
      %s18 = sphi 0, %s22
      %p19 = scmp.ge.s32.totalorder %s18, 24
      %s25 = sphi 0, %s44
      %s26 = sphi 0, %s40
      %s27 = sphi 0, %s36
      %s28 = sphi 0, %s25
      %s29 = sphi 0, %s26
      %s30 = sphi 0, %s27
      %s31 = sphi 0, %s28
      %s32 = sphi 0, %s29
      %s33 = sphi 0, %s30
      %s63 = sphi 0, %s65
      %s66 = sphi 0, %s63
      %s67 = sphi 0, %s66
      %s83 = sphi 0, %s67
      %s89 = sphi 0, %s91
      %s92 = sphi 0, %s89
      %s93 = sphi 0, %s92
      %s109 = sphi 0, %s93
      %s115 = sphi 0, %s117
      %s118 = sphi 0, %s115
      %s119 = sphi 0, %s118
      %s135 = sphi 0, %s119
      %s143 = sphi 0, %s145
      %s146 = sphi 0, %s143
      %s147 = sphi 0, %s146
      %s163 = sphi 0, %s147
    $region4: #{tpu_custom_call.1} parent=1 // loop_header_branch
      %21 = sbr.rel (%p19) target = $region8
    $region5: #{tpu_custom_call.1} parent=1 // loop_body
      %s23 = ssub.s32 %s18, 1
      %s24 = ssub.s32 %s18, 2
      %s34 = sadd.s32 1, %s27
      %p35 = scmp.ge.s32.totalorder %s34, 11
      %s36 = scalar_select %p35, 0, %s34
      %s37 = sadd.s32 1, %s26
      %s38 = scalar_select %p35, %s37, %s26
      %p39 = scmp.ge.s32.totalorder %s38, 2
      %s40 = scalar_select %p39, 0, %s38
      %s41 = sadd.s32 1, %s25
      %s42 = scalar_select %p39, %s41, %s25
      %p43 = scmp.ge.s32.totalorder %s42, 1
      %s44 = scalar_select %p43, 0, %s42
      %s45 = smul.u32 %s26, 8
      %s46 = sadd.s32 %s45, %s27
      %s47 = ssub.s32 %s46, 3
      %p48 = scmp.gt.s32.totalorder %s47, 0
      %s49 = scalar_select %p48, %s47, 0
      %p50 = scmp.lt.s32.totalorder %s49, 7
      %s51 = scalar_select %p50, %s49, 7
      %s52 = smul.u32 %s40, 8
      %s53 = sadd.s32 %s52, %s36
      %s54 = ssub.s32 %s53, 3
      %p55 = scmp.gt.s32.totalorder %s54, 0
      %s56 = scalar_select %p55, %s54, 0
      %p57 = scmp.lt.s32.totalorder %s56, 7
      %s58 = scalar_select %p57, %s56, 7
      %s59 = ssub.s32 %s51, %s58
      %s60 = ssub.s32 %s25, %s44
      %s61 = sor.u32 %s59, %s60
      %p62 = scmp.eq.s32.totalorder %s61, 0
      %s64 = sadd.s32 %s63, 1
      %s65 = scalar_select %p62, %s63, %s64
      %p68 = pneg %p62
      %p69 = scmp.eq.s32.totalorder %s18, 21
      %p70 = por %p68, %p69
      %p71 = scmp.ne.s32.totalorder %s63, %s66
      %p72 = scmp.eq.s32.totalorder %s18, 0
      %p73 = por %p71, %p72
      %p74 = scmp.ne.s32.totalorder %s63, %s66
      %p75 = scmp.eq.s32.totalorder %s23, 21
      %p76 = por %p74, %p75
      %p77 = scmp.ne.s32.totalorder %s66, %s67
      %p78 = scmp.eq.s32.totalorder %s23, 0
      %p79 = por %p77, %p78
      %p80 = scmp.ne.s32.totalorder %s66, %s67
      %p81 = scmp.eq.s32.totalorder %s24, 21
      %p82 = por %p80, %p81
      %p84 = scmp.ne.s32.totalorder %s67, %s83
      %p85 = scmp.eq.s32.totalorder %s24, 0
      %p86 = por %p84, %p85
      %s87 = ssub.s32 %s27, %s36
      %p88 = scmp.eq.s32.totalorder %s87, 0
      %s90 = sadd.s32 %s89, 1
      %s91 = scalar_select %p88, %s89, %s90
      %p94 = pneg %p88
      %p95 = scmp.eq.s32.totalorder %s18, 21
      %p96 = por %p94, %p95
      %p97 = scmp.ne.s32.totalorder %s89, %s92
      %p98 = scmp.eq.s32.totalorder %s18, 0
      %p99 = por %p97, %p98
      %p100 = scmp.ne.s32.totalorder %s89, %s92
      %p101 = scmp.eq.s32.totalorder %s23, 21
      %p102 = por %p100, %p101
      %p103 = scmp.ne.s32.totalorder %s92, %s93
      %p104 = scmp.eq.s32.totalorder %s23, 0
      %p105 = por %p103, %p104
      %p106 = scmp.ne.s32.totalorder %s92, %s93
      %p107 = scmp.eq.s32.totalorder %s24, 21
      %p108 = por %p106, %p107
      %p110 = scmp.ne.s32.totalorder %s93, %s109
      %p111 = scmp.eq.s32.totalorder %s24, 0
      %p112 = por %p110, %p111
      %s113 = ssub.s32 %s26, %s40
      %p114 = scmp.eq.s32.totalorder %s113, 0
      %s116 = sadd.s32 %s115, 1
      %s117 = scalar_select %p114, %s115, %s116
      %p120 = pneg %p114
      %p121 = scmp.eq.s32.totalorder %s18, 21
      %p122 = por %p120, %p121
      %p123 = scmp.ne.s32.totalorder %s115, %s118
      %p124 = scmp.eq.s32.totalorder %s18, 0
      %p125 = por %p123, %p124
      %p126 = scmp.ne.s32.totalorder %s115, %s118
      %p127 = scmp.eq.s32.totalorder %s23, 21
      %p128 = por %p126, %p127
      %p129 = scmp.ne.s32.totalorder %s118, %s119
      %p130 = scmp.eq.s32.totalorder %s23, 0
      %p131 = por %p129, %p130
      %p132 = scmp.ne.s32.totalorder %s118, %s119
      %p133 = scmp.eq.s32.totalorder %s24, 21
      %p134 = por %p132, %p133
      %p136 = scmp.ne.s32.totalorder %s119, %s135
      %p137 = scmp.eq.s32.totalorder %s24, 0
      %p138 = por %p136, %p137
      %s139 = ssub.s32 %s25, %s44
      %s140 = ssub.s32 %s26, %s40
      %s141 = sor.u32 %s139, %s140
      %p142 = scmp.eq.s32.totalorder %s141, 0
      %s144 = sadd.s32 %s143, 1
      %s145 = scalar_select %p142, %s143, %s144
      %p148 = pneg %p142
      %p149 = scmp.eq.s32.totalorder %s18, 21
      %p150 = por %p148, %p149
      %p151 = scmp.ne.s32.totalorder %s143, %s146
      %p152 = scmp.eq.s32.totalorder %s18, 0
      %p153 = por %p151, %p152
      %p154 = scmp.ne.s32.totalorder %s143, %s146
      %p155 = scmp.eq.s32.totalorder %s23, 21
      %p156 = por %p154, %p155
      %p157 = scmp.ne.s32.totalorder %s146, %s147
      %p158 = scmp.eq.s32.totalorder %s23, 0
      %p159 = por %p157, %p158
      %p160 = scmp.ne.s32.totalorder %s146, %s147
      %p161 = scmp.eq.s32.totalorder %s24, 21
      %p162 = por %p160, %p161
      %p164 = scmp.ne.s32.totalorder %s147, %s163
      %p165 = scmp.eq.s32.totalorder %s24, 0
      %p166 = por %p164, %p165
      %p167 = scmp.le.s32.totalorder 1, %s18
      %p168 = scmp.lt.s32.totalorder %s18, 23
      %p169 = pnand %p167, %p168
      %p170 = pneg %p169
      // Predicated region
      $region9: #{tpu_custom_call.1} parent=5 // pred_check
        _
      $region10: #{tpu_custom_call.1} parent=5 // pred_check_branch
        %172 = sbr.rel (%p169) target = $region12
      $region11: #{tpu_custom_call.1} parent=5 // pred_region
        %s173 = ssub.s32 %s18, 1
      $region12: #{tpu_custom_call.1} parent=5 // pred_fallthru
        _
      %p174 = scmp.lt.s32.totalorder %s18, 22
      // Predicated region
      $region13: #{tpu_custom_call.1} parent=5 // pred_check
        %p175 = pneg %p174
      $region14: #{tpu_custom_call.1} parent=5 // pred_check_branch
        %177 = sbr.rel (%p175) target = $region16
      $region15: #{tpu_custom_call.1} parent=5 // pred_region
        // Predicated region
        $region17: #{tpu_custom_call.1} parent=15 // pred_check
          %p178 = pneg %p73
        $region18: #{tpu_custom_call.1} parent=15 // pred_check_branch
          %180 = sbr.rel (%p178) target = $region20
        $region19: #{tpu_custom_call.1} parent=15 // pred_region
          %s181 = sand.u32 %s63, 1
          %s182 = scalar_lea.sflag [#allocation4], %s181
          %s183 = sand.u32 %s63, 1
          %s184 = smul.addr %s183, 8
          %s185 = scalar_lea.vmem [#allocation3], %s184
          %s186 = smul.u32 %s26, 8
          %s187 = sadd.s32 %s186, %s27
          %s188 = ssub.s32 %s187, 3
          %p189 = scmp.gt.s32.totalorder %s188, 0
          %s190 = scalar_select %p189, %s188, 0
          %p191 = scmp.lt.s32.totalorder %s190, 7
          %s192 = scalar_select %p191, %s190, 7
          %s194 = ssub.s32 128, 128
          %195 = vsyncadd %s182, %s194
          %s196 = sadd.s32 %s25, %s192
          %s197 = smul.addr %s196, 128
          %s198 = scalar_lea.hbm %s0, %s197
          %s200 = sshll.u32 %s185, 4
          %s201 = int_to_ptr.vmem [resolvable:$true] %s200
          %203 = dma.hbm_to_vmem [thread:$0]  %s198, 128, %s201, %s182
        $region20: #{tpu_custom_call.1} parent=15 // pred_fallthru
          _
        // Predicated region
        $region21: #{tpu_custom_call.1} parent=15 // pred_check
          %p204 = pneg %p99
        $region22: #{tpu_custom_call.1} parent=15 // pred_check_branch
          %206 = sbr.rel (%p204) target = $region24
        $region23: #{tpu_custom_call.1} parent=15 // pred_region
          %s207 = sand.u32 %s89, 1
          %s208 = scalar_lea.sflag [#allocation7], %s207
          %s209 = sand.u32 %s89, 1
          %s210 = smul.addr %s209, 72
          %s211 = scalar_lea.vmem [#allocation6], %s210
          %s213 = ssub.s32 1152, 1152
          %214 = vsyncadd %s208, %s213
          %s215 = smul.addr %s27, 9
          %s216 = smul.addr %s215, 128
          %s217 = scalar_lea.hbm %s1, %s216
          %s218 = sshll.u32 %s211, 4
          %s219 = int_to_ptr.vmem [resolvable:$true] %s218
          %224 = dma.hbm_to_vmem [thread:$0]  %s217, 1152, %s219, %s208, 128, 128, 8
        $region24: #{tpu_custom_call.1} parent=15 // pred_fallthru
          _
        // Predicated region
        $region25: #{tpu_custom_call.1} parent=15 // pred_check
          %p225 = pneg %p125
        $region26: #{tpu_custom_call.1} parent=15 // pred_check_branch
          %227 = sbr.rel (%p225) target = $region28
        $region27: #{tpu_custom_call.1} parent=15 // pred_region
          %p228 = scmp.lt.s32.totalorder %s26, 1
          %s229 = scalar_select %p228, %s26, 1
          %s230 = scalar_lea.vmem %s2, %s229
        $region28: #{tpu_custom_call.1} parent=15 // pred_fallthru
          _
      $region16: #{tpu_custom_call.1} parent=5 // pred_fallthru
        _
      %p231 = scmp.le.s32.totalorder 1, %s18
      %p232 = scmp.lt.s32.totalorder %s18, 23
      %p233 = pnand %p231, %p232
      %p234 = pneg %p233
      // Predicated region
      $region29: #{tpu_custom_call.1} parent=5 // pred_check
        _
      $region30: #{tpu_custom_call.1} parent=5 // pred_check_branch
        %236 = sbr.rel (%p233) target = $region32
      $region31: #{tpu_custom_call.1} parent=5 // pred_region
        %s237 = ssub.s32 %s18, 1
        %s238 = sand.u32 %s66, 1
        %s239 = scalar_lea.sflag [#allocation4], %s238
        %s240 = sand.u32 %s66, 1
        %s241 = smul.addr %s240, 8
        %s242 = scalar_lea.vmem [#allocation3], %s241
        // Predicated region
        $region33: #{tpu_custom_call.1} parent=31 // pred_check
          %p243 = pneg %p79
        $region34: #{tpu_custom_call.1} parent=31 // pred_check_branch
          %245 = sbr.rel (%p243) target = $region36
        $region35: #{tpu_custom_call.1} parent=31 // pred_region
          %246 = dma.done %s239, 128
        $region36: #{tpu_custom_call.1} parent=31 // pred_fallthru
          _
        %s247 = sand.u32 %s92, 1
        %s248 = scalar_lea.sflag [#allocation7], %s247
        %s249 = sand.u32 %s92, 1
        %s250 = smul.addr %s249, 72
        %s251 = scalar_lea.vmem [#allocation6], %s250
        // Predicated region
        $region37: #{tpu_custom_call.1} parent=31 // pred_check
          %p252 = pneg %p105
        $region38: #{tpu_custom_call.1} parent=31 // pred_check_branch
          %254 = sbr.rel (%p252) target = $region40
        $region39: #{tpu_custom_call.1} parent=31 // pred_region
          %255 = dma.done %s248, 1152
        $region40: #{tpu_custom_call.1} parent=31 // pred_fallthru
          _
        %s256 = sand.u32 %s66, 1
        %s257 = scalar_lea.sflag [#allocation4], %s256
        %s258 = sand.u32 %s66, 1
        %s259 = smul.addr %s258, 8
        %s260 = scalar_lea.vmem [#allocation3], %s259
        %p261 = pneg %p79
        %p262 = pneg %p76
        %s263 = sand.u32 %s92, 1
        %s264 = scalar_lea.sflag [#allocation7], %s263
        %s265 = sand.u32 %s92, 1
        %s266 = smul.addr %s265, 72
        %s267 = scalar_lea.vmem [#allocation6], %s266
        %p268 = pneg %p105
        %p269 = pneg %p102
        %p270 = scmp.lt.s32.totalorder %s29, 1
        %s271 = scalar_select %p270, %s29, 1
        %s272 = scalar_lea.vmem %s2, %s271
        %p273 = pneg %p131
        %p274 = pneg %p128
        %p275 = pneg %p159
        %p276 = pneg %p156
        %s277 = sand.u32 %s146, 1
        %s278 = scalar_lea.sflag [#allocation5], %s277
        %s279 = sand.u32 %s146, 1
        %s280 = smul.addr %s279, 8
        %s281 = scalar_lea.vmem [#allocation8], %s280
        %s282 = smul.u32 %s29, 8
        %s283 = sadd.s32 %s282, %s30
        %s284 = ssub.s32 %s283, 3
        %p285 = scmp.gt.s32.totalorder %s284, 0
        %s286 = scalar_select %p285, %s284, 0
        %p287 = scmp.lt.s32.totalorder %s286, 7
        %s288 = scalar_select %p287, %s286, 7
        %p289 = scmp.lt.s32.totalorder %s29, 1
        %s290 = scalar_select %p289, %s29, 1
        %s291 = scalar_lea.vmem %s2, %s290
        %p292 = scmp.eq.s32.totalorder %s30, 0
        // Predicated region
        $region41: #{tpu_custom_call.1} parent=31 // pred_check
          %p293 = pneg %p292
        $region42: #{tpu_custom_call.1} parent=31 // pred_check_branch
          %295 = sbr.rel (%p293) target = $region44
        $region43: #{tpu_custom_call.1} parent=31 // pred_region
          %296 = vst [vmem:[#allocation2] sm:$0xff] 0.0
        $region44: #{tpu_custom_call.1} parent=31 // pred_fallthru
          _
        %s297 = smul.u32 %s29, 8
        %s298 = sadd.s32 %s297, %s30
        %s299 = ssub.s32 %s298, 3
        %p300 = scmp.ge.s32.totalorder %s299, 0
        %p301 = scmp.lt.s32.totalorder %s299, 8
        %p302 = pnand %p300, %p301
        %p303 = pneg %p302
        // Predicated region
        $region45: #{tpu_custom_call.1} parent=31 // pred_check
          _
        $region46: #{tpu_custom_call.1} parent=31 // pred_check_branch
          %305 = sbr.rel (%p302) target = $region48
        $region47: #{tpu_custom_call.1} parent=31 // pred_region
          %v306 = vld [vmem:[#allocation2] sm:$0xff]
          %v307 = vld [vmem:[%s242] sm:$0xff]
          %v308 = vld [vmem:[%s251] sm:$0xff]
          %v309 = vld [vmem:[%s251 + $0x8] sm:$0xff]
          %v310 = vld [vmem:[%s251 + $0x10] sm:$0xff]
          %v311 = vld [vmem:[%s251 + $0x18] sm:$0xff]
          %v312 = vld [vmem:[%s251 + $0x20] sm:$0xff]
          %v313 = vld [vmem:[%s251 + $0x28] sm:$0xff]
          %v314 = vld [vmem:[%s251 + $0x30] sm:$0xff]
          %v315 = vld [vmem:[%s251 + $0x38] sm:$0xff]
          %v316 = vld [vmem:[%s251 + $0x40] sm:$0x3]
          %vm317 = vcmask 539648
          %v319 = vsel %vm317, %v307, 0
          %vm321 = vcmask 1041408
          %v323 = vsel %vm321, %v316, 0
          %325 = vmatprep.subr.mxu0 0.0
          %326 = vmatpush1.msra.mxu0 %v308
          %327 = vmatprep.subr.mxu0 0.0
          %328 = vmatpush1.msra.mxu0 %v309
          %329 = vmatprep.subr.mxu0 0.0
          %330 = vmatpush1.msra.mxu0 %v310
          %331 = vmatprep.subr.mxu0 0.0
          %332 = vmatpush1.msra.mxu0 %v311
          %333 = vmatprep.subr.mxu0 0.0
          %334 = vmatpush1.msra.mxu0 %v312
          %335 = vmatprep.subr.mxu0 0.0
          %336 = vmatpush1.msra.mxu0 %v313
          %337 = vmatprep.subr.mxu0 0.0
          %338 = vmatpush1.msra.mxu0 %v314
          %339 = vmatprep.subr.mxu0 0.0
          %340 = vmatpush1.msra.mxu0 %v315
          %341 = vmatprep.subr.mxu0 0.0
          %342 = vmatpush1.msra.mxu0 %v323
          %343 = vmatprep.subr.mxu0 0.0
          %344 = vmatpush1.msra.mxu0 0.0
          %345 = vmatprep.subr.mxu0 0.0
          %346 = vmatpush1.msra.mxu0 0.0
          %347 = vmatprep.subr.mxu0 0.0
          %348 = vmatpush1.msra.mxu0 0.0
          %349 = vmatprep.subr.mxu0 0.0
          %350 = vmatpush1.msra.mxu0 0.0
          %351 = vmatprep.subr.mxu0 0.0
          %352 = vmatpush1.msra.mxu0 0.0
          %353 = vmatprep.subr.mxu0 0.0
          %354 = vmatpush1.msra.mxu0 0.0
          %355 = vmatprep.subr.mxu0 0.0
          %356 = vmatpush1.msra.mxu0 0.0
          %357 = vmatprep.subr.mxu0 0.0
          %358 = vmatpush1.msra.mxu0 0.0
          %359 = vmatprep.subr.mxu0 0.0
          %360 = vmatpush1.msra.mxu0 0.0
          %361 = vmatprep.subr.mxu0 0.0
          %362 = vmatpush1.msra.mxu0 0.0
          %363 = vmatprep.subr.mxu0 0.0
          %364 = vmatpush1.msra.mxu0 0.0
          %365 = vmatprep.subr.mxu0 0.0
          %366 = vmatpush1.msra.mxu0 0.0
          %367 = vmatprep.subr.mxu0 0.0
          %368 = vmatpush1.msra.mxu0 0.0
          %369 = vmatprep.subr.mxu0 0.0
          %370 = vmatpush1.msra.mxu0 0.0
          %371 = vmatprep.subr.mxu0 0.0
          %372 = vmatpush1.msra.mxu0 0.0
          %373 = vmatprep.subr.mxu0 0.0
          %374 = vmatpush1.msra.mxu0 0.0
          %375 = vmatprep.subr.mxu0 0.0
          %376 = vmatpush1.msra.mxu0 0.0
          %377 = vmatprep.subr.mxu0 0.0
          %378 = vmatpush1.msra.mxu0 0.0
          %379 = vmatprep.subr.mxu0 0.0
          %380 = vmatpush1.msra.mxu0 0.0
          %381 = vmatprep.subr.mxu0 0.0
          %382 = vmatpush1.msra.mxu0 0.0
          %383 = vmatprep.subr.mxu0 0.0
          %384 = vmatpush1.msra.mxu0 0.0
          %385 = vmatprep.subr.mxu0 0.0
          %386 = vmatpush1.msra.mxu0 0.0
          %387 = vmatprep.subr.mxu0 0.0
          %388 = vmatpush1.msra.mxu0 0.0
          %389 = vmatprep.mubr.f32.mxu0 0.0
          %390 = vmatmul.mubr.f32.gmra.mrb[0].mxu0 %v319
          %v391 = vpop.f32.mrb[0].mxu0
          %v392 = vadd.f32 0.0, %v391
          %v393 = vpop.f32.mrb[0].mxu0
          %394 = vdwg.mxu0
          %v395 = vadd.f32 %v306, %v392
          %396 = vst [vmem:[#allocation2] sm:$0xff] %v395
        $region48: #{tpu_custom_call.1} parent=31 // pred_fallthru
          _
        %p397 = scmp.eq.s32.totalorder %s30, 10
        // Predicated region
        $region49: #{tpu_custom_call.1} parent=31 // pred_check
          %p398 = pneg %p397
        $region50: #{tpu_custom_call.1} parent=31 // pred_check_branch
          %400 = sbr.rel (%p398) target = $region52
        $region51: #{tpu_custom_call.1} parent=31 // pred_region
          %v401 = vld [vmem:[#allocation2] sm:$0xff]
          %v402 = vld [vmem:[%s291] sm:$0x1]
          %v404 = vlaneseq
          %v405 = vshrl.u32 %v404, 7
          %v406 = vsub.s32 0, %v405
          %v407 = vrot.slane %v402, %v406
          %v409 = vmul.f32 %v401, %v407
          %410 = vst [vmem:[%s281] sm:$0xff] %v409
        $region52: #{tpu_custom_call.1} parent=31 // pred_fallthru
          _
        %s411 = sand.u32 %s146, 1
        %s412 = scalar_lea.sflag [#allocation5], %s411
        %s413 = sand.u32 %s146, 1
        %s414 = smul.addr %s413, 8
        %s415 = scalar_lea.vmem [#allocation8], %s414
        // Predicated region
        $region53: #{tpu_custom_call.1} parent=31 // pred_check
          %p416 = pneg %p156
        $region54: #{tpu_custom_call.1} parent=31 // pred_check_branch
          %418 = sbr.rel (%p416) target = $region56
        $region55: #{tpu_custom_call.1} parent=31 // pred_region
          %s420 = ssub.s32 128, 128
          %421 = vsyncadd %s412, %s420
          %s422 = smul.addr %s28, 2
          %s423 = sadd.s32 %s29, %s422
          %s424 = smul.addr %s423, 128
          %s425 = scalar_lea.hbm %s3, %s424
          %s427 = sshll.u32 %s415, 4
          %s428 = int_to_ptr.vmem [resolvable:$true] %s427
          %430 = dma.vmem_to_hbm [thread:$0]  %s428, 128, %s425, %s412
        $region56: #{tpu_custom_call.1} parent=31 // pred_fallthru
          _
      $region32: #{tpu_custom_call.1} parent=5 // pred_fallthru
        _
      %p431 = scmp.le.s32.totalorder 2, %s18
      // Predicated region
      $region57: #{tpu_custom_call.1} parent=5 // pred_check
        %p432 = pneg %p431
      $region58: #{tpu_custom_call.1} parent=5 // pred_check_branch
        %434 = sbr.rel (%p432) target = $region60
      $region59: #{tpu_custom_call.1} parent=5 // pred_region
        %s435 = ssub.s32 %s18, 2
        // Predicated region
        $region61: #{tpu_custom_call.1} parent=59 // pred_check
          %p436 = pneg %p162
        $region62: #{tpu_custom_call.1} parent=59 // pred_check_branch
          %438 = sbr.rel (%p436) target = $region64
        $region63: #{tpu_custom_call.1} parent=59 // pred_region
          %s439 = sand.u32 %s147, 1
          %s440 = scalar_lea.sflag [#allocation5], %s439
          %s441 = sand.u32 %s147, 1
          %s442 = smul.addr %s441, 8
          %s443 = scalar_lea.vmem [#allocation8], %s442
          %444 = dma.done %s440, 128
        $region64: #{tpu_custom_call.1} parent=59 // pred_fallthru
          _
      $region60: #{tpu_custom_call.1} parent=5 // pred_fallthru
        _
    $region6: #{tpu_custom_call.1} parent=1 // loop_footer
      %s22 = sadd.s32 1, %s18
    $region7: #{tpu_custom_call.1} parent=1 // loop_footer_branch
      %17 = sbr.rel target = $region3
    $region8: #{tpu_custom_call.1} parent=1 // loop_exit
      _
    %445 = vsyncpa [#allocation4], 1
    %s446 = scalar_lea.sflag [#allocation4], 1
    %447 = vsyncpa %s446, 1
    %448 = vsyncpa [#allocation7], 1
    %s449 = scalar_lea.sflag [#allocation7], 1
    %450 = vsyncpa %s449, 1
    %451 = vsyncpa [#allocation5], 1
    %s452 = scalar_lea.sflag [#allocation5], 1
    %453 = vsyncpa %s452, 1

</llo_original>
